<compile_context>
chip_gen: v7x
topology: tpu7x:2x2x1
jax: 0.10.0
libtpu: 0.0.40
codegen_flags: <defaults>
</compile_context>

<pallas_src>
import jax
import jax.numpy as jnp
import numpy as np
from jax.experimental import pallas as pl
from jax.experimental.pallas import tpu as pltpu

# ----- Model configuration (mirrors DeepFM.__init__) ------------------------
NUM_LIN = 13                       # fields handled by nn.Linear(1, E)
NUM_CAT = 26                       # fields handled by nn.Embedding(vocab, E)
FIELD_SIZE = NUM_LIN + NUM_CAT     # 39
EMBED = 4                          # embedding_size
HIDDEN = [32, 32]                  # hidden_dims (deep stack is 156->32->32)
NUM_CLASSES = 10                   # declared by the module but never used in forward
CAT_VOCAB = 10                     # feature_sizes[13:] (synthetic, small)
BN_EPS = 1e-5
N_BATCH = 8

LIN_W = NUM_LIN * EMBED            # 52
CAT_W = NUM_CAT * EMBED            # 104
DEEP_IN = FIELD_SIZE * EMBED       # 156
OH_W = NUM_CAT * CAT_VOCAB         # 260  one-hot lanes: 26 fields x 10 vocab

# ----- expansion-matrix column layout (output of MXU matmul #1) --------------
XV_REP0 = 0                        # xv_cat repeated 10x  -> one-hot value candidates
E2_LIN0 = XV_REP0 + OH_W           # 260: xv-scaled 2nd-order linear-field embeddings
LINRED0 = E2_LIN0 + LIN_W          # 312: [sum(e1_lin)+c_deep | s_lin(4) | deep_lin]
IDX_SHIFT0 = 384                   # 384: idx[f] - vocab_pos  (==0 marks the hot lane)
EXP_COLS = IDX_SHIFT0 + OH_W       # 644
# IDX_SHIFT0 = 384 = 3*128 so xv_rep (phase 0) and idx_shift (phase 0) are
# lane-phase aligned for the jnp.where below.

# ----- expansion-matrix row layout (kernel's matmul-1 LHS) --------------------
ROW_XIXV = 0                       # xi*xv for the 13 linear fields
ROW_XV = NUM_LIN                   # 13: xv for all 39 fields
ROW_IDX = NUM_LIN + FIELD_SIZE     # 52: category indices (float-valued ints)
ROW_ONE = ROW_IDX + NUM_CAT        # 78: constant 1 (carries -vocab_pos offsets, c_deep)
EXP_ROWS = ROW_ONE + 1             # 79

RCAT_COLS = 8                      # [sum emb1 | emb2(4) | emb2.w_deep | sum emb2^2 | pad]


def _round_up(x, m):
    return ((x + m - 1) // m) * m


# ----- Pallas kernel ----------------------------------------------------------
def deepfm_kernel(xi_ref, xv_ref, bias_ref, pexp_ref, rcat_ref, out_ref):
    f32 = jnp.float32
    cdt = pexp_ref.dtype                        # bf16 in production, f32 for debug

    xi = xi_ref[...]                            # (T, 39) f32
    xv = xv_ref[...]                            # (T, 39) f32
    T = xi.shape[0]

    # LHS of the expansion matmul: [xi*xv (lin) | xv | idx (cat) | 1]  -> (T, 79)
    xixv = xi[:, :NUM_LIN] * xv[:, :NUM_LIN]
    ones = jnp.ones((T, 1), f32)
    lhs = jnp.concatenate([xixv, xv, xi[:, NUM_LIN:], ones], axis=1).astype(cdt)

    # MXU matmul 1: linear-field FM math (folded reductions), the xv-scaled
    # one-hot value candidates, and the idx - vocab_pos pattern — all at once.
    t = jnp.dot(lhs, pexp_ref[...], preferred_element_type=f32)    # (T, 644)

    xv_rep = t[:, XV_REP0:XV_REP0 + OH_W]                          # (T, 260)
    e2_lin = t[:, E2_LIN0:E2_LIN0 + LIN_W]                         # (T, 52)
    first_lin = t[:, LINRED0:LINRED0 + 1]                          # sum(e1_lin)+c_deep
    s_lin = t[:, LINRED0 + 1:LINRED0 + 1 + EMBED]                  # (T, 4)
    deep_lin = t[:, LINRED0 + 1 + EMBED:LINRED0 + 2 + EMBED]       # (T, 1)
    idx_shift = t[:, IDX_SHIFT0:IDX_SHIFT0 + OH_W]                 # (T, 260)

    # In-kernel embedding "gather": xv-scaled one-hot over (field, vocab) lanes.
    # idx_shift is an exact integer-valued f32 (indices/offsets are exact in
    # bf16), so the equality test is exact; zero-padded tail rows stay zero.
    onehot = jnp.where(idx_shift == 0.0, xv_rep, 0.0)              # (T, 260)

    # MXU matmuls 2+3: all categorical reductions folded through the one-hot.
    rcat = rcat_ref[...]
    y_cat = jnp.dot(onehot.astype(cdt), rcat[:, 0:6],
                    preferred_element_type=f32)                    # (T, 6)
    sq_cat = jnp.dot((onehot * onehot).astype(cdt), rcat[:, 6:7],
                     preferred_element_type=f32)                   # (T, 1)

    first_cat = y_cat[:, 0:1]
    s = s_lin + y_cat[:, 1:1 + EMBED]                              # sum_f e2_f   (T, 4)
    deep_cat = y_cat[:, 1 + EMBED:2 + EMBED]

    sq_lin = jnp.sum(e2_lin * e2_lin, axis=1, keepdims=True)       # (T, 1)
    fm_second = 0.5 * (jnp.sum(s * s, axis=1, keepdims=True) - sq_lin - sq_cat)

    out_ref[...] = (first_lin + first_cat + fm_second
                    + deep_lin + deep_cat + bias_ref[...])


# ----- Parameter packing (tiny, wrapper-side JAX glue) ------------------------
def pack_params(params, dtype=jnp.bfloat16):
    f32 = jnp.float32

    # Fold BN1/BN2 (eval) and the Linear2 + final sum into w_deep (156,) + c_deep.
    # TODO(synk): Dropout is stochastic in train mode; implemented as eval-mode identity.
    # TODO(synk): BatchNorm1d uses eval-mode running stats (folded to scale/shift).
    bn1_s = params["bn1_gamma"] / jnp.sqrt(params["bn1_var"] + BN_EPS)
    bn1_b = params["bn1_beta"] - params["bn1_mean"] * bn1_s
    dw1_f = params["dw1"] * bn1_s[None, :]                 # (156, 32)
    db1_f = params["db1"] * bn1_s + bn1_b                  # (32,)
    bn2_s = params["bn2_gamma"] / jnp.sqrt(params["bn2_var"] + BN_EPS)
    bn2_b = params["bn2_beta"] - params["bn2_mean"] * bn2_s
    v = jnp.sum(params["dw2"] * bn2_s[None, :], axis=1)    # (32,)
    c2 = jnp.sum(params["db2"] * bn2_s + bn2_b)            # scalar
    w_deep = dw1_f @ v                                     # (156,)
    c_deep = jnp.dot(db1_f, v) + c2                        # scalar
    w_deep_lin = w_deep[:LIN_W].reshape(NUM_LIN, EMBED)
    w_deep_cat = w_deep[LIN_W:].reshape(NUM_CAT, EMBED)

    w1, b1 = params["w1_lin"], params["b1_lin"]            # (13, 4) each
    w2, b2 = params["w2_lin"], params["b2_lin"]

    pexp = jnp.zeros((EXP_ROWS, EXP_COLS), f32)
    rep10 = jnp.repeat(jnp.eye(NUM_CAT, dtype=f32), CAT_VOCAB, axis=1)   # (26, 260)
    exp4 = jnp.repeat(jnp.eye(NUM_LIN, dtype=f32), EMBED, axis=1)        # (13, 52)

    # xv_cat repeated 10x: the one-hot value candidates.
    pexp = pexp.at[ROW_XV + NUM_LIN:ROW_XV + FIELD_SIZE,
                   XV_REP0:XV_REP0 + OH_W].set(rep10)
    # e2_lin = xv*(xi*w2 + b2)  (needed explicitly only for its squares).
    pexp = pexp.at[ROW_XIXV:ROW_XIXV + NUM_LIN, E2_LIN0:E2_LIN0 + LIN_W].set(
        exp4 * w2.reshape(LIN_W)[None, :])
    pexp = pexp.at[ROW_XV:ROW_XV + NUM_LIN, E2_LIN0:E2_LIN0 + LIN_W].set(
        exp4 * b2.reshape(LIN_W)[None, :])
    # Folded linear-field reductions: sum(e1_lin)+c_deep, per-dim field sums of
    # e2_lin, and the deep-MLP contribution of the linear fields.
    pexp = pexp.at[ROW_XIXV:ROW_XIXV + NUM_LIN, LINRED0].set(jnp.sum(w1, axis=1))
    pexp = pexp.at[ROW_XV:ROW_XV + NUM_LIN, LINRED0].set(jnp.sum(b1, axis=1))
    pexp = pexp.at[ROW_ONE, LINRED0].set(c_deep)
    pexp = pexp.at[ROW_XIXV:ROW_XIXV + NUM_LIN,
                   LINRED0 + 1:LINRED0 + 1 + EMBED].set(w2)
    pexp = pexp.at[ROW_XV:ROW_XV + NUM_LIN,
                   LINRED0 + 1:LINRED0 + 1 + EMBED].set(b2)
    pexp = pexp.at[ROW_XIXV:ROW_XIXV + NUM_LIN, LINRED0 + 1 + EMBED].set(
        jnp.sum(w2 * w_deep_lin, axis=1))
    pexp = pexp.at[ROW_XV:ROW_XV + NUM_LIN, LINRED0 + 1 + EMBED].set(
        jnp.sum(b2 * w_deep_lin, axis=1))
    # idx[f] - vocab_pos pattern (== 0 marks each field's hot lane).
    pexp = pexp.at[ROW_IDX:ROW_IDX + NUM_CAT,
                   IDX_SHIFT0:IDX_SHIFT0 + OH_W].set(rep10)
    offs = jnp.tile(jnp.arange(CAT_VOCAB, dtype=f32), NUM_CAT)           # (260,)
    pexp = pexp.at[ROW_ONE, IDX_SHIFT0:IDX_SHIFT0 + OH_W].set(-offs)

    # Per-(field, vocab) categorical reduction tables (consumed via the one-hot).
    emb1, emb2 = params["emb1"], params["emb2"]            # (26, 10, 4) each
    rcat = jnp.zeros((OH_W, RCAT_COLS), f32)
    rcat = rcat.at[:, 0].set(jnp.sum(emb1, axis=-1).reshape(OH_W))          # fm first
    rcat = rcat.at[:, 1:1 + EMBED].set(emb2.reshape(OH_W, EMBED))           # field sums
    rcat = rcat.at[:, 1 + EMBED].set(
        jnp.sum(emb2 * w_deep_cat[:, None, :], axis=-1).reshape(OH_W))      # deep
    rcat = rcat.at[:, 2 + EMBED].set(jnp.sum(emb2 * emb2, axis=-1).reshape(OH_W))

    return pexp.astype(dtype), rcat.astype(dtype)


# ----- Wrapper ----------------------------------------------------------------
def deepfm_forward(Xi, Xv, params, bias, *, compute_dtype=jnp.bfloat16, tile_n=None):
    """Xi: (N, 39, 1) float (categorical fields hold integer values),
       Xv: (N, 39, 1) float, bias: (N,).  Returns (N,) f32."""
    f32 = jnp.float32
    N = Xi.shape[0]

    pexp, rcat = pack_params(params, compute_dtype)

    # Metadata-only reshapes — no wrapper-side HBM round trips.
    # NOTE: the PyTorch forward's (E,N)*(N,1) broadcast is only well-formed for
    # the intended per-sample scaling, which is what we implement.
    xi = Xi.reshape(N, FIELD_SIZE).astype(f32)
    xv = Xv.reshape(N, FIELD_SIZE).astype(f32)
    bias_col = bias.reshape(N, 1).astype(f32)

    if tile_n is None:
        # Big tiles for HBM-bound efficiency, but keep >=2 grid steps when the
        # batch allows it so v7x's two TensorCores both get work.
        tile_n = min(1024, _round_up(max(8, (N + 1) // 2), 8))
    grid_n = pl.cdiv(N, tile_n)   # trailing partial block replaces jnp.pad

    flops = 2 * N * (EXP_ROWS * EXP_COLS + 7 * OH_W + 4 * OH_W + 2 * LIN_W)
    bytes_accessed = (N * (2 * FIELD_SIZE + 2) * 4
                      + int(pexp.size) * pexp.dtype.itemsize
                      + int(rcat.size) * rcat.dtype.itemsize)

    out = pl.pallas_call(
        deepfm_kernel,
        out_shape=jax.ShapeDtypeStruct((N, 1), f32),
        grid_spec=pltpu.PrefetchScalarGridSpec(
            num_scalar_prefetch=0,
            grid=(grid_n,),
            in_specs=[
                pl.BlockSpec((tile_n, FIELD_SIZE), lambda i: (i, 0)),     # Xi
                pl.BlockSpec((tile_n, FIELD_SIZE), lambda i: (i, 0)),     # Xv
                pl.BlockSpec((tile_n, 1), lambda i: (i, 0)),              # bias
                pl.BlockSpec((EXP_ROWS, EXP_COLS), lambda i: (0, 0)),     # expansion params
                pl.BlockSpec((OH_W, RCAT_COLS), lambda i: (0, 0)),        # cat reductions
            ],
            out_specs=pl.BlockSpec((tile_n, 1), lambda i: (i, 0)),
        ),
        compiler_params=pltpu.CompilerParams(
            dimension_semantics=("parallel",),
            vmem_limit_bytes=48 * 1024 * 1024),
        cost_estimate=pl.CostEstimate(
            flops=flops, transcendentals=0, bytes_accessed=bytes_accessed),
    )(xi, xv, bias_col, pexp, rcat)
    return out[:, 0]


# ----- Pure-JAX reference (mirrors the PyTorch forward, eval mode) ------------
def reference_forward(Xi, Xv, p, bias):
    f32 = jnp.float32
    first, second = [], []
    for i in range(FIELD_SIZE):
        v = Xv[:, i, 0].astype(f32)[:, None]
        if i <= 12:
            x = Xi[:, i, :].astype(f32)                                  # (N, 1)
            e1 = x * p["w1_lin"][i][None, :] + p["b1_lin"][i][None, :]
            e2 = x * p["w2_lin"][i][None, :] + p["b2_lin"][i][None, :]
        else:
            idx = Xi[:, i, 0].astype(jnp.int32)
            e1 = p["emb1"][i - NUM_LIN][idx]
            e2 = p["emb2"][i - NUM_LIN][idx]
        first.append(e1 * v)
        second.append(e2 * v)
    fm_first = jnp.concatenate(first, axis=1)
    ssum = sum(second)
    fm_second = 0.5 * (ssum * ssum - sum(e * e for e in second))
    deep = jnp.concatenate(second, axis=1)
    h = deep @ p["dw1"] + p["db1"]
    h = (h - p["bn1_mean"]) / jnp.sqrt(p["bn1_var"] + BN_EPS) * p["bn1_gamma"] + p["bn1_beta"]
    h = h @ p["dw2"] + p["db2"]
    h = (h - p["bn2_mean"]) / jnp.sqrt(p["bn2_var"] + BN_EPS) * p["bn2_gamma"] + p["bn2_beta"]
    return (jnp.sum(fm_first, axis=1) + jnp.sum(fm_second, axis=1)
            + jnp.sum(h, axis=1) + bias)


# ----- Deterministic parameter init --------------------------------------------
def init_params(key):
    ks = jax.random.split(key, 18)
    f32 = jnp.float32
    H1, H2 = HIDDEN            # deep stack is 156 -> H1 -> H2 (num_classes layer unused)
    return {
        "w1_lin": 0.1 * jax.random.normal(ks[0], (NUM_LIN, EMBED), f32),
        "b1_lin": 0.1 * jax.random.normal(ks[1], (NUM_LIN, EMBED), f32),
        "w2_lin": 0.1 * jax.random.normal(ks[2], (NUM_LIN, EMBED), f32),
        "b2_lin": 0.1 * jax.random.normal(ks[3], (NUM_LIN, EMBED), f32),
        "emb1": 0.1 * jax.random.normal(ks[4], (NUM_CAT, CAT_VOCAB, EMBED), f32),
        "emb2": 0.1 * jax.random.normal(ks[5], (NUM_CAT, CAT_VOCAB, EMBED), f32),
        "dw1": 0.1 * jax.random.normal(ks[6], (DEEP_IN, H1), f32),
        "db1": 0.1 * jax.random.normal(ks[7], (H1,), f32),
        "bn1_gamma": 1.0 + 0.1 * jax.random.normal(ks[8], (H1,), f32),
        "bn1_beta": 0.1 * jax.random.normal(ks[9], (H1,), f32),
        "bn1_mean": 0.1 * jax.random.normal(ks[10], (H1,), f32),
        "bn1_var": 1.0 + 0.1 * jnp.abs(jax.random.normal(ks[11], (H1,), f32)),
        "dw2": 0.1 * jax.random.normal(ks[12], (H1, H2), f32),
        "db2": 0.1 * jax.random.normal(ks[13], (H2,), f32),
        "bn2_gamma": 1.0 + 0.1 * jax.random.normal(ks[14], (H2,), f32),
        "bn2_beta": 0.1 * jax.random.normal(ks[15], (H2,), f32),
        "bn2_mean": 0.1 * jax.random.normal(ks[16], (H2,), f32),
        "bn2_var": 1.0 + 0.1 * jnp.abs(jax.random.normal(ks[17], (H2,), f32)),
    }


if __name__ == "__main__":
    key = jax.random.PRNGKey(0)
    k_xi, k_xv, k_idx, k_bias, k_par = jax.random.split(key, 5)

    # Xi: (N, 39, 1) — first 13 fields are continuous values, last 26 are
    # integer category indices (stored as float, like torch dtype=torch.float).
    xi_cont = jax.random.normal(k_xi, (N_BATCH, NUM_LIN, 1), jnp.float32)
    xi_cat = jax.random.randint(k_idx, (N_BATCH, NUM_CAT, 1), 0, CAT_VOCAB).astype(jnp.float32)
    Xi = jnp.concatenate([xi_cont, xi_cat], axis=1)               # (8, 39, 1)
    Xv = jax.random.uniform(k_xv, (N_BATCH, FIELD_SIZE, 1), jnp.float32)

    params = init_params(k_par)
    # TODO(synk): the PyTorch forward draws a fresh random bias Parameter每 call;
    # we pass a deterministic one instead.
    bias = jax.random.normal(k_bias, (N_BATCH,), jnp.float32)

    ref = jax.block_until_ready(reference_forward(Xi, Xv, params, bias))

    # f32 debug path: exact algebraic folding, matches the reference to 1e-4.
    out_f32 = jax.block_until_ready(
        deepfm_forward(Xi, Xv, params, bias, compute_dtype=jnp.float32))
    np.testing.assert_allclose(np.asarray(out_f32), np.asarray(ref), rtol=1e-4, atol=1e-4)

    # bf16 production path (bf16 MXU operands, f32 accumulation).
    out_bf16 = jax.block_until_ready(deepfm_forward(Xi, Xv, params, bias))
    np.testing.assert_allclose(np.asarray(out_bf16), np.asarray(ref), rtol=5e-2, atol=5e-2)

    print("KERNEL_OK")
</pallas_src>

<mosaic_0001>
module attributes {stable_mosaic.version = 11 : i64} {
  func.func @deepfm_kernel(%arg0: i32, %arg1: memref<8x39xf32, #tpu.memory_space<vmem>>, %arg2: memref<8x39xf32, #tpu.memory_space<vmem>>, %arg3: memref<8x1xf32, #tpu.memory_space<vmem>>, %arg4: memref<79x644xf32, #tpu.memory_space<vmem>>, %arg5: memref<260x8xf32, #tpu.memory_space<vmem>>, %arg6: memref<8x1xf32, #tpu.memory_space<vmem>>) attributes {dimension_semantics = [#tpu.dimension_semantics<parallel>], iteration_bounds = array<i64: 1>, scalar_prefetch = 0 : i64, scratch_operands = 0 : i64, tpu.core_type = #tpu.core_type<tc>, window_params = [{transform_indices = @transform_0, window_bounds = array<i64: 8, 39>}, {transform_indices = @transform_1, window_bounds = array<i64: 8, 39>}, {transform_indices = @transform_2, window_bounds = array<i64: 8, 1>}, {pipeline_mode = #tpu.pipeline_mode<synchronous>, transform_indices = @transform_3, window_bounds = array<i64: 79, 644>}, {pipeline_mode = #tpu.pipeline_mode<synchronous>, transform_indices = @transform_4, window_bounds = array<i64: 260, 8>}, {transform_indices = @transform_5, window_bounds = array<i64: 8, 1>}]} {
    %c0 = arith.constant 0 : index
    %c0_0 = arith.constant 0 : index
    %0 = vector.load %arg1[%c0, %c0_0] : memref<8x39xf32, #tpu.memory_space<vmem>>, vector<8x39xf32>
    %c0_1 = arith.constant 0 : index
    %c0_2 = arith.constant 0 : index
    %1 = vector.load %arg2[%c0_1, %c0_2] : memref<8x39xf32, #tpu.memory_space<vmem>>, vector<8x39xf32>
    %2 = vector.extract_strided_slice %0 {offsets = [0, 0], sizes = [8, 13], strides = [1, 1]} : vector<8x39xf32> to vector<8x13xf32>
    %3 = vector.extract_strided_slice %1 {offsets = [0, 0], sizes = [8, 13], strides = [1, 1]} : vector<8x39xf32> to vector<8x13xf32>
    %4 = arith.mulf %2, %3 : vector<8x13xf32>
    %cst = arith.constant 1.000000e+00 : f32
    %5 = vector.broadcast %cst : f32 to vector<8x1xf32>
    %6 = vector.extract_strided_slice %0 {offsets = [0, 13], sizes = [8, 26], strides = [1, 1]} : vector<8x39xf32> to vector<8x26xf32>
    %7 = tpu.concatenate %4, %1, %6, %5 in 1 : vector<8x13xf32>, vector<8x39xf32>, vector<8x26xf32>, vector<8x1xf32> -> vector<8x79xf32>
    %c0_3 = arith.constant 0 : index
    %c0_4 = arith.constant 0 : index
    %8 = vector.load %arg4[%c0_3, %c0_4] : memref<79x644xf32, #tpu.memory_space<vmem>>, vector<79x644xf32>
    %cst_5 = arith.constant dense<0.000000e+00> : vector<8x644xf32>
    %9 = tpu.matmul %7, %8, %cst_5 {dimension_numbers = #tpu.dot_dimension_numbers<[1], [0], [0], [1], [0, 0, 1, 1], [], []>} : vector<8x79xf32>, vector<79x644xf32>, vector<8x644xf32> -> vector<8x644xf32>
    %10 = vector.extract_strided_slice %9 {offsets = [0, 0], sizes = [8, 260], strides = [1, 1]} : vector<8x644xf32> to vector<8x260xf32>
    %11 = vector.extract_strided_slice %9 {offsets = [0, 260], sizes = [8, 52], strides = [1, 1]} : vector<8x644xf32> to vector<8x52xf32>
    %12 = vector.extract_strided_slice %9 {offsets = [0, 312], sizes = [8, 1], strides = [1, 1]} : vector<8x644xf32> to vector<8x1xf32>
    %13 = vector.extract_strided_slice %9 {offsets = [0, 313], sizes = [8, 4], strides = [1, 1]} : vector<8x644xf32> to vector<8x4xf32>
    %14 = vector.extract_strided_slice %9 {offsets = [0, 317], sizes = [8, 1], strides = [1, 1]} : vector<8x644xf32> to vector<8x1xf32>
    %15 = vector.extract_strided_slice %9 {offsets = [0, 384], sizes = [8, 260], strides = [1, 1]} : vector<8x644xf32> to vector<8x260xf32>
    %cst_6 = arith.constant 0.000000e+00 : f32
    %16 = vector.broadcast %cst_6 : f32 to vector<8x260xf32>
    %17 = arith.cmpf oeq, %15, %16 : vector<8x260xf32>
    %cst_7 = arith.constant 0.000000e+00 : f32
    %18 = vector.broadcast %cst_7 : f32 to vector<8x260xf32>
    %19 = arith.select %17, %10, %18 : vector<8x260xi1>, vector<8x260xf32>
    %c0_8 = arith.constant 0 : index
    %c0_9 = arith.constant 0 : index
    %20 = vector.load %arg5[%c0_8, %c0_9] : memref<260x8xf32, #tpu.memory_space<vmem>>, vector<260x8xf32>
    %21 = vector.extract_strided_slice %20 {offsets = [0, 0], sizes = [260, 6], strides = [1, 1]} : vector<260x8xf32> to vector<260x6xf32>
    %cst_10 = arith.constant dense<0.000000e+00> : vector<8x6xf32>
    %22 = tpu.matmul %19, %21, %cst_10 {dimension_numbers = #tpu.dot_dimension_numbers<[1], [0], [0], [1], [0, 0, 1, 1], [], []>} : vector<8x260xf32>, vector<260x6xf32>, vector<8x6xf32> -> vector<8x6xf32>
    %23 = arith.mulf %19, %19 : vector<8x260xf32>
    %24 = vector.extract_strided_slice %20 {offsets = [0, 6], sizes = [260, 1], strides = [1, 1]} : vector<260x8xf32> to vector<260x1xf32>
    %cst_11 = arith.constant dense<0.000000e+00> : vector<8x1xf32>
    %25 = tpu.matmul %23, %24, %cst_11 {dimension_numbers = #tpu.dot_dimension_numbers<[1], [0], [0], [1], [0, 0, 1, 1], [], []>} : vector<8x260xf32>, vector<260x1xf32>, vector<8x1xf32> -> vector<8x1xf32>
    %26 = vector.extract_strided_slice %22 {offsets = [0, 0], sizes = [8, 1], strides = [1, 1]} : vector<8x6xf32> to vector<8x1xf32>
    %27 = vector.extract_strided_slice %22 {offsets = [0, 1], sizes = [8, 4], strides = [1, 1]} : vector<8x6xf32> to vector<8x4xf32>
    %28 = arith.addf %13, %27 : vector<8x4xf32>
    %29 = vector.extract_strided_slice %22 {offsets = [0, 5], sizes = [8, 1], strides = [1, 1]} : vector<8x6xf32> to vector<8x1xf32>
    %30 = arith.mulf %11, %11 : vector<8x52xf32>
    %cst_12 = arith.constant dense<0.000000e+00> : vector<8xf32>
    %31 = vector.multi_reduction <add>, %30, %cst_12 [1] : vector<8x52xf32> to vector<8xf32>
    %32 = vector.shape_cast %31 : vector<8xf32> to vector<8x1xf32>
    %33 = arith.mulf %28, %28 : vector<8x4xf32>
    %cst_13 = arith.constant dense<0.000000e+00> : vector<8xf32>
    %34 = vector.multi_reduction <add>, %33, %cst_13 [1] : vector<8x4xf32> to vector<8xf32>
    %35 = vector.shape_cast %34 : vector<8xf32> to vector<8x1xf32>
    %36 = arith.subf %35, %32 : vector<8x1xf32>
    %37 = arith.subf %36, %25 : vector<8x1xf32>
    %cst_14 = arith.constant 5.000000e-01 : f32
    %38 = vector.broadcast %cst_14 : f32 to vector<8x1xf32>
    %39 = arith.mulf %38, %37 : vector<8x1xf32>
    %40 = arith.addf %12, %26 : vector<8x1xf32>
    %41 = arith.addf %40, %39 : vector<8x1xf32>
    %42 = arith.addf %41, %14 : vector<8x1xf32>
    %43 = arith.addf %42, %29 : vector<8x1xf32>
    %c0_15 = arith.constant 0 : index
    %c0_16 = arith.constant 0 : index
    %44 = vector.load %arg3[%c0_15, %c0_16] : memref<8x1xf32, #tpu.memory_space<vmem>>, vector<8x1xf32>
    %45 = arith.addf %43, %44 : vector<8x1xf32>
    %c0_17 = arith.constant 0 : index
    %c0_18 = arith.constant 0 : index
    %46 = vector.load %arg6[%c0_17, %c0_18] : memref<8x1xf32, #tpu.memory_space<vmem>>, vector<8x1xf32>
    tpu.vector_store %arg6[%c0_17, %c0_18], %45 {strides = array<i32>} : memref<8x1xf32, #tpu.memory_space<vmem>>, vector<8x1xf32>,
    return
  }
  func.func @transform_0(%arg0: i32) -> (i32, i32) {
    %c0_i32 = arith.constant 0 : i32
    %c0_i32_0 = arith.constant 0 : i32
    return %arg0, %c0_i32 : i32, i32
  }
  func.func @transform_1(%arg0: i32) -> (i32, i32) {
    %c0_i32 = arith.constant 0 : i32
    %c0_i32_0 = arith.constant 0 : i32
    return %arg0, %c0_i32 : i32, i32
  }
  func.func @transform_2(%arg0: i32) -> (i32, i32) {
    %c0_i32 = arith.constant 0 : i32
    %c0_i32_0 = arith.constant 0 : i32
    return %arg0, %c0_i32 : i32, i32
  }
  func.func @transform_3(%arg0: i32) -> (i32, i32) {
    %c0_i32 = arith.constant 0 : i32
    %c0_i32_0 = arith.constant 0 : i32
    %c0_i32_1 = arith.constant 0 : i32
    return %c0_i32, %c0_i32_0 : i32, i32
  }
  func.func @transform_4(%arg0: i32) -> (i32, i32) {
    %c0_i32 = arith.constant 0 : i32
    %c0_i32_0 = arith.constant 0 : i32
    %c0_i32_1 = arith.constant 0 : i32
    return %c0_i32, %c0_i32_0 : i32, i32
  }
  func.func @transform_5(%arg0: i32) -> (i32, i32) {
    %c0_i32 = arith.constant 0 : i32
    %c0_i32_0 = arith.constant 0 : i32
    return %arg0, %c0_i32 : i32, i32
  }
}

</mosaic_0001>

<llo_original>
// kernel: tpu_custom_call.1
$region0: #{tpu_custom_call.1}
  #allocation0 [shape = 'u32[]', space=smem, size = 0x4, offset = 0x4, fixed_abs, tag = 'smem constant byte address 0x4 - core index']
  #allocation1 [shape = 'u32[144,128]{1,0:T(1,128)}', space=vmem, size = 0x12000, scoped, tag = 'internal scratch']
  %s0 = inlined_call_operand.vmem [shape: f32[8,39], index: 0, kind: input, shape index: {}]
  %s1 = inlined_call_operand.vmem [shape: f32[8,39], index: 1, kind: input, shape index: {}]
  %s2 = inlined_call_operand.vmem [shape: f32[8,1], index: 2, kind: input, shape index: {}]
  %s3 = inlined_call_operand.hbm [shape: f32[79,644], index: 3, kind: input, shape index: {}]
  %s4 = inlined_call_operand.vmem [shape: f32[260,8], index: 4, kind: input, shape index: {}]
  %s5 = inlined_call_operand.vmem [shape: f32[8,1], index: 5, kind: output, shape index: {}]
  %s6 = sld [smem:[#allocation0]]
  $region34: #{tpu_custom_call.1} parent=0
    _
  %s8 = ssub.s32 1, %s6
  %s9 = scalar_select 0, %s8, %s6
  $region1: #{tpu_custom_call.1} parent=0
    #allocation2 [shape = 'u8[245760]{0}', space=vmem, size = 0x3c000, scoped, tag = 'input window, operand 3, single buffered']
    #allocation3 [shape = 's32[1]{0}', space=sflag, size = 0x4, scoped, tag = 'scoped memory for tpu_custom_call.1']
    %10 = vsyncpa [#allocation3], 0
    // Predicated region
    $region2: #{tpu_custom_call.1} parent=1 // pred_check
      _
    $region3: #{tpu_custom_call.1} parent=1 // pred_check_branch
      %12 = sbr.rel (0) target = $region5
    $region4: #{tpu_custom_call.1} parent=1 // pred_region
      _
    $region5: #{tpu_custom_call.1} parent=1 // pred_fallthru
      _
    // Predicated region
    $region6: #{tpu_custom_call.1} parent=1 // pred_check
      _
    $region7: #{tpu_custom_call.1} parent=1 // pred_check_branch
      %14 = sbr.rel (0) target = $region9
    $region8: #{tpu_custom_call.1} parent=1 // pred_region
      _
    $region9: #{tpu_custom_call.1} parent=1 // pred_fallthru
      _
    // Predicated region
    $region10: #{tpu_custom_call.1} parent=1 // pred_check
      _
    $region11: #{tpu_custom_call.1} parent=1 // pred_check_branch
      %16 = sbr.rel (0) target = $region13
    $region12: #{tpu_custom_call.1} parent=1 // pred_region
      _
    $region13: #{tpu_custom_call.1} parent=1 // pred_fallthru
      _
    // Predicated region
    $region14: #{tpu_custom_call.1} parent=1 // pred_check
      _
    $region15: #{tpu_custom_call.1} parent=1 // pred_check_branch
      %18 = sbr.rel (0) target = $region17
    $region16: #{tpu_custom_call.1} parent=1 // pred_region
      %s20 = ssub.s32 7680, 7680
      %21 = vsyncadd [#allocation3], %s20
      %s22 = sshll.u32 [#allocation2], 4
      %s23 = int_to_ptr.vmem [resolvable:$true] %s22
      %28 = dma.hbm_to_vmem [thread:$0]  %s3, 7680, %s23, [#allocation3], 768, 768, 48
    $region17: #{tpu_custom_call.1} parent=1 // pred_fallthru
      _
    // Predicated region
    $region18: #{tpu_custom_call.1} parent=1 // pred_check
      _
    $region19: #{tpu_custom_call.1} parent=1 // pred_check_branch
      %30 = sbr.rel (0) target = $region21
    $region20: #{tpu_custom_call.1} parent=1 // pred_region
      _
    $region21: #{tpu_custom_call.1} parent=1 // pred_fallthru
      _
    // Predicated region
    $region22: #{tpu_custom_call.1} parent=1 // pred_check
      _
    $region23: #{tpu_custom_call.1} parent=1 // pred_check_branch
      %32 = sbr.rel (0) target = $region25
    $region24: #{tpu_custom_call.1} parent=1 // pred_region
      %33 = dma.done [#allocation3], 7680
    $region25: #{tpu_custom_call.1} parent=1 // pred_fallthru
      _
    %v34 = vld [vmem:[%s0] sm:$0xff]
    %v35 = vld [vmem:[%s1] sm:$0xff]
    %v36 = vmul.f32 %v34, %v35
    %38 = vrot.lane.b32.xlu0 %v35, 13
    %v39 = vpop.permute.xlu0 %38
    %42 = vrot.lane.b32.xlu0 %v34, 39
    %v43 = vpop.permute.xlu0 %42
    %vm45 = vcmask 105472
    %v46 = vsel %vm45, %v36, %v39
    %vm47 = vcmask 424960
    %v48 = vsel %vm47, %v46, %v43
    %vm49 = vcmask 637952
    %v50 = vsel %vm49, %v48, 1.0
    %v51 = vld [vmem:[#allocation2] sm:$0xff]
    %v52 = vld [vmem:[#allocation2 + $0x8] sm:$0xff]
    %v53 = vld [vmem:[#allocation2 + $0x10] sm:$0xff]
    %v54 = vld [vmem:[#allocation2 + $0x18] sm:$0xff]
    %v55 = vld [vmem:[#allocation2 + $0x20] sm:$0xff]
    %v56 = vld [vmem:[#allocation2 + $0x28] sm:$0xff]
    %v57 = vld [vmem:[#allocation2 + $0x30] sm:$0xff]
    %v58 = vld [vmem:[#allocation2 + $0x38] sm:$0xff]
    %v59 = vld [vmem:[#allocation2 + $0x40] sm:$0xff]
    %v60 = vld [vmem:[#allocation2 + $0x48] sm:$0xff]
    %v61 = vld [vmem:[#allocation2 + $0x50] sm:$0xff]
    %v62 = vld [vmem:[#allocation2 + $0x58] sm:$0xff]
    %v63 = vld [vmem:[#allocation2 + $0x60] sm:$0xff]
    %v64 = vld [vmem:[#allocation2 + $0x68] sm:$0xff]
    %v65 = vld [vmem:[#allocation2 + $0x70] sm:$0xff]
    %v66 = vld [vmem:[#allocation2 + $0x78] sm:$0xff]
    %v67 = vld [vmem:[#allocation2 + $0x80] sm:$0xff]
    %v68 = vld [vmem:[#allocation2 + $0x88] sm:$0xff]
    %v69 = vld [vmem:[#allocation2 + $0x90] sm:$0xff]
    %v70 = vld [vmem:[#allocation2 + $0x98] sm:$0xff]
    %v71 = vld [vmem:[#allocation2 + $0xa0] sm:$0xff]
    %v72 = vld [vmem:[#allocation2 + $0xa8] sm:$0xff]
    %v73 = vld [vmem:[#allocation2 + $0xb0] sm:$0xff]
    %v74 = vld [vmem:[#allocation2 + $0xb8] sm:$0xff]
    %v75 = vld [vmem:[#allocation2 + $0xc0] sm:$0xff]
    %v76 = vld [vmem:[#allocation2 + $0xc8] sm:$0xff]
    %v77 = vld [vmem:[#allocation2 + $0xd0] sm:$0xff]
    %v78 = vld [vmem:[#allocation2 + $0xd8] sm:$0xff]
    %v79 = vld [vmem:[#allocation2 + $0xe0] sm:$0xff]
    %v80 = vld [vmem:[#allocation2 + $0xe8] sm:$0xff]
    %v81 = vld [vmem:[#allocation2 + $0xf0] sm:$0xff]
    %v82 = vld [vmem:[#allocation2 + $0xf8] sm:$0xff]
    %v83 = vld [vmem:[#allocation2 + $0x100] sm:$0xff]
    %v84 = vld [vmem:[#allocation2 + $0x108] sm:$0xff]
    %v85 = vld [vmem:[#allocation2 + $0x110] sm:$0xff]
    %v86 = vld [vmem:[#allocation2 + $0x118] sm:$0xff]
    %v87 = vld [vmem:[#allocation2 + $0x120] sm:$0xff]
    %v88 = vld [vmem:[#allocation2 + $0x128] sm:$0xff]
    %v89 = vld [vmem:[#allocation2 + $0x130] sm:$0xff]
    %v90 = vld [vmem:[#allocation2 + $0x138] sm:$0xff]
    %v91 = vld [vmem:[#allocation2 + $0x140] sm:$0xff]
    %v92 = vld [vmem:[#allocation2 + $0x148] sm:$0xff]
    %v93 = vld [vmem:[#allocation2 + $0x150] sm:$0xff]
    %v94 = vld [vmem:[#allocation2 + $0x158] sm:$0xff]
    %v95 = vld [vmem:[#allocation2 + $0x160] sm:$0xff]
    %v96 = vld [vmem:[#allocation2 + $0x168] sm:$0xff]
    %v97 = vld [vmem:[#allocation2 + $0x170] sm:$0xff]
    %v98 = vld [vmem:[#allocation2 + $0x178] sm:$0xff]
    %v99 = vld [vmem:[#allocation2 + $0x180] sm:$0xff]
    %v100 = vld [vmem:[#allocation2 + $0x188] sm:$0xff]
    %v101 = vld [vmem:[#allocation2 + $0x190] sm:$0xff]
    %v102 = vld [vmem:[#allocation2 + $0x198] sm:$0xff]
    %v103 = vld [vmem:[#allocation2 + $0x1a0] sm:$0xff]
    %v104 = vld [vmem:[#allocation2 + $0x1a8] sm:$0xff]
    %v105 = vld [vmem:[#allocation2 + $0x1b0] sm:$0x7f]
    %v106 = vld [vmem:[#allocation2 + $0x1b8] sm:$0x7f]
    %v107 = vld [vmem:[#allocation2 + $0x1c0] sm:$0x7f]
    %v108 = vld [vmem:[#allocation2 + $0x1c8] sm:$0x7f]
    %v109 = vld [vmem:[#allocation2 + $0x1d0] sm:$0x7f]
    %v110 = vld [vmem:[#allocation2 + $0x1d8] sm:$0x7f]
    %vm111 = vcmask 646144
    %v113 = vsel %vm111, %v50, 0
    %vm115 = vcmask 1046528
    %v117 = vsel %vm115, %v105, 0
    %v120 = vsel %vm115, %v106, 0
    %v123 = vsel %vm115, %v107, 0
    %v126 = vsel %vm115, %v108, 0
    %v129 = vsel %vm115, %v109, 0
    %v132 = vsel %vm115, %v110, 0
    %134 = vmatprep.subr.mxu0 %v52
    %135 = vmatpush1.msra.mxu0 %v51
    %136 = vmatprep.subr.mxu0 %v58
    %137 = vmatpush1.msra.mxu0 %v57
    %138 = vmatprep.subr.mxu0 %v64
    %139 = vmatpush1.msra.mxu0 %v63
    %140 = vmatprep.subr.mxu0 %v70
    %141 = vmatpush1.msra.mxu0 %v69
    %142 = vmatprep.subr.mxu0 %v76
    %143 = vmatpush1.msra.mxu0 %v75
    %144 = vmatprep.subr.mxu0 %v82
    %145 = vmatpush1.msra.mxu0 %v81
    %146 = vmatprep.subr.mxu0 %v88
    %147 = vmatpush1.msra.mxu0 %v87
    %148 = vmatprep.subr.mxu0 %v94
    %149 = vmatpush1.msra.mxu0 %v93
    %150 = vmatprep.subr.mxu0 %v100
    %151 = vmatpush1.msra.mxu0 %v99
    %152 = vmatprep.subr.mxu0 %v120
    %153 = vmatpush1.msra.mxu0 %v117
    %154 = vmatprep.subr.mxu0 0.0
    %155 = vmatpush1.msra.mxu0 0.0
    %156 = vmatprep.subr.mxu0 0.0
    %157 = vmatpush1.msra.mxu0 0.0
    %158 = vmatprep.subr.mxu0 0.0
    %159 = vmatpush1.msra.mxu0 0.0
    %160 = vmatprep.subr.mxu0 0.0
    %161 = vmatpush1.msra.mxu0 0.0
    %162 = vmatprep.subr.mxu0 0.0
    %163 = vmatpush1.msra.mxu0 0.0
    %164 = vmatprep.subr.mxu0 0.0
    %165 = vmatpush1.msra.mxu0 0.0
    %166 = vmatprep.subr.mxu0 0.0
    %167 = vmatpush1.msra.mxu0 0.0
    %168 = vmatprep.subr.mxu0 0.0
    %169 = vmatpush1.msra.mxu0 0.0
    %170 = vmatprep.subr.mxu0 0.0
    %171 = vmatpush1.msra.mxu0 0.0
    %172 = vmatprep.subr.mxu0 0.0
    %173 = vmatpush1.msra.mxu0 0.0
    %174 = vmatprep.subr.mxu0 0.0
    %175 = vmatpush1.msra.mxu0 0.0
    %176 = vmatprep.subr.mxu0 0.0
    %177 = vmatpush1.msra.mxu0 0.0
    %178 = vmatprep.subr.mxu0 0.0
    %179 = vmatpush1.msra.mxu0 0.0
    %180 = vmatprep.subr.mxu0 0.0
    %181 = vmatpush1.msra.mxu0 0.0
    %182 = vmatprep.subr.mxu0 0.0
    %183 = vmatpush1.msra.mxu0 0.0
    %184 = vmatprep.subr.mxu0 0.0
    %185 = vmatpush1.msra.mxu0 0.0
    %186 = vmatprep.subr.mxu0 0.0
    %187 = vmatpush1.msra.mxu0 0.0
    %188 = vmatprep.subr.mxu0 0.0
    %189 = vmatpush1.msra.mxu0 0.0
    %190 = vmatprep.subr.mxu0 0.0
    %191 = vmatpush1.msra.mxu0 0.0
    %192 = vmatprep.subr.mxu0 0.0
    %193 = vmatpush1.msra.mxu0 0.0
    %194 = vmatprep.subr.mxu0 0.0
    %195 = vmatpush1.msra.mxu0 0.0
    %196 = vmatprep.subr.mxu0 0.0
    %197 = vmatpush1.msra.mxu0 0.0
    %198 = vmatprep.mubr.f32.mxu0 0.0
    %199 = vmatmul.mubr.f32.gmra.mrb[0].mxu0 %v113
    %v200 = vpop.f32.mrb[0].mxu0
    %v201 = vadd.f32 0.0, %v200
    %v202 = vpop.f32.mrb[0].mxu0
    %v203 = vadd.f32 0.0, %v202
    %204 = vdwg.mxu0
    %205 = vmatprep.subr.mxu0 %v54
    %206 = vmatpush1.msra.mxu0 %v53
    %207 = vmatprep.subr.mxu0 %v60
    %208 = vmatpush1.msra.mxu0 %v59
    %209 = vmatprep.subr.mxu0 %v66
    %210 = vmatpush1.msra.mxu0 %v65
    %211 = vmatprep.subr.mxu0 %v72
    %212 = vmatpush1.msra.mxu0 %v71
    %213 = vmatprep.subr.mxu0 %v78
    %214 = vmatpush1.msra.mxu0 %v77
    %215 = vmatprep.subr.mxu0 %v84
    %216 = vmatpush1.msra.mxu0 %v83
    %217 = vmatprep.subr.mxu0 %v90
    %218 = vmatpush1.msra.mxu0 %v89
    %219 = vmatprep.subr.mxu0 %v96
    %220 = vmatpush1.msra.mxu0 %v95
    %221 = vmatprep.subr.mxu0 %v102
    %222 = vmatpush1.msra.mxu0 %v101
    %223 = vmatprep.subr.mxu0 %v126
    %224 = vmatpush1.msra.mxu0 %v123
    %225 = vmatprep.subr.mxu0 0.0
    %226 = vmatpush1.msra.mxu0 0.0
    %227 = vmatprep.subr.mxu0 0.0
    %228 = vmatpush1.msra.mxu0 0.0
    %229 = vmatprep.subr.mxu0 0.0
    %230 = vmatpush1.msra.mxu0 0.0
    %231 = vmatprep.subr.mxu0 0.0
    %232 = vmatpush1.msra.mxu0 0.0
    %233 = vmatprep.subr.mxu0 0.0
    %234 = vmatpush1.msra.mxu0 0.0
    %235 = vmatprep.subr.mxu0 0.0
    %236 = vmatpush1.msra.mxu0 0.0
    %237 = vmatprep.subr.mxu0 0.0
    %238 = vmatpush1.msra.mxu0 0.0
    %239 = vmatprep.subr.mxu0 0.0
    %240 = vmatpush1.msra.mxu0 0.0
    %241 = vmatprep.subr.mxu0 0.0
    %242 = vmatpush1.msra.mxu0 0.0
    %243 = vmatprep.subr.mxu0 0.0
    %244 = vmatpush1.msra.mxu0 0.0
    %245 = vmatprep.subr.mxu0 0.0
    %246 = vmatpush1.msra.mxu0 0.0
    %247 = vmatprep.subr.mxu0 0.0
    %248 = vmatpush1.msra.mxu0 0.0
    %249 = vmatprep.subr.mxu0 0.0
    %250 = vmatpush1.msra.mxu0 0.0
    %251 = vmatprep.subr.mxu0 0.0
    %252 = vmatpush1.msra.mxu0 0.0
    %253 = vmatprep.subr.mxu0 0.0
    %254 = vmatpush1.msra.mxu0 0.0
    %255 = vmatprep.subr.mxu0 0.0
    %256 = vmatpush1.msra.mxu0 0.0
    %257 = vmatprep.subr.mxu0 0.0
    %258 = vmatpush1.msra.mxu0 0.0
    %259 = vmatprep.subr.mxu0 0.0
    %260 = vmatpush1.msra.mxu0 0.0
    %261 = vmatprep.subr.mxu0 0.0
    %262 = vmatpush1.msra.mxu0 0.0
    %263 = vmatprep.subr.mxu0 0.0
    %264 = vmatpush1.msra.mxu0 0.0
    %265 = vmatprep.subr.mxu0 0.0
    %266 = vmatpush1.msra.mxu0 0.0
    %267 = vmatprep.subr.mxu0 0.0
    %268 = vmatpush1.msra.mxu0 0.0
    %269 = vmatprep.mubr.f32.mxu0 0.0
    %270 = vmatmul.mubr.f32.gmra.mrb[0].mxu0 %v113
    %v271 = vpop.f32.mrb[0].mxu0
    %v272 = vadd.f32 0.0, %v271
    %v273 = vpop.f32.mrb[0].mxu0
    %v274 = vadd.f32 0.0, %v273
    %275 = vdwg.mxu0
    %276 = vmatprep.subr.mxu0 %v56
    %277 = vmatpush1.msra.mxu0 %v55
    %278 = vmatprep.subr.mxu0 %v62
    %279 = vmatpush1.msra.mxu0 %v61
    %280 = vmatprep.subr.mxu0 %v68
    %281 = vmatpush1.msra.mxu0 %v67
    %282 = vmatprep.subr.mxu0 %v74
    %283 = vmatpush1.msra.mxu0 %v73
    %284 = vmatprep.subr.mxu0 %v80
    %285 = vmatpush1.msra.mxu0 %v79
    %286 = vmatprep.subr.mxu0 %v86
    %287 = vmatpush1.msra.mxu0 %v85
    %288 = vmatprep.subr.mxu0 %v92
    %289 = vmatpush1.msra.mxu0 %v91
    %290 = vmatprep.subr.mxu0 %v98
    %291 = vmatpush1.msra.mxu0 %v97
    %292 = vmatprep.subr.mxu0 %v104
    %293 = vmatpush1.msra.mxu0 %v103
    %294 = vmatprep.subr.mxu0 %v132
    %295 = vmatpush1.msra.mxu0 %v129
    %296 = vmatprep.subr.mxu0 0.0
    %297 = vmatpush1.msra.mxu0 0.0
    %298 = vmatprep.subr.mxu0 0.0
    %299 = vmatpush1.msra.mxu0 0.0
    %300 = vmatprep.subr.mxu0 0.0
    %301 = vmatpush1.msra.mxu0 0.0
    %302 = vmatprep.subr.mxu0 0.0
    %303 = vmatpush1.msra.mxu0 0.0
    %304 = vmatprep.subr.mxu0 0.0
    %305 = vmatpush1.msra.mxu0 0.0
    %306 = vmatprep.subr.mxu0 0.0
    %307 = vmatpush1.msra.mxu0 0.0
    %308 = vmatprep.subr.mxu0 0.0
    %309 = vmatpush1.msra.mxu0 0.0
    %310 = vmatprep.subr.mxu0 0.0
    %311 = vmatpush1.msra.mxu0 0.0
    %312 = vmatprep.subr.mxu0 0.0
    %313 = vmatpush1.msra.mxu0 0.0
    %314 = vmatprep.subr.mxu0 0.0
    %315 = vmatpush1.msra.mxu0 0.0
    %316 = vmatprep.subr.mxu0 0.0
    %317 = vmatpush1.msra.mxu0 0.0
    %318 = vmatprep.subr.mxu0 0.0
    %319 = vmatpush1.msra.mxu0 0.0
    %320 = vmatprep.subr.mxu0 0.0
    %321 = vmatpush1.msra.mxu0 0.0
    %322 = vmatprep.subr.mxu0 0.0
    %323 = vmatpush1.msra.mxu0 0.0
    %324 = vmatprep.subr.mxu0 0.0
    %325 = vmatpush1.msra.mxu0 0.0
    %326 = vmatprep.subr.mxu0 0.0
    %327 = vmatpush1.msra.mxu0 0.0
    %328 = vmatprep.subr.mxu0 0.0
    %329 = vmatpush1.msra.mxu0 0.0
    %330 = vmatprep.subr.mxu0 0.0
    %331 = vmatpush1.msra.mxu0 0.0
    %332 = vmatprep.subr.mxu0 0.0
    %333 = vmatpush1.msra.mxu0 0.0
    %334 = vmatprep.subr.mxu0 0.0
    %335 = vmatpush1.msra.mxu0 0.0
    %336 = vmatprep.subr.mxu0 0.0
    %337 = vmatpush1.msra.mxu0 0.0
    %338 = vmatprep.subr.mxu0 0.0
    %339 = vmatpush1.msra.mxu0 0.0
    %340 = vmatprep.mubr.f32.mxu0 0.0
    %341 = vmatmul.mubr.f32.gmra.mrb[0].mxu0 %v113
    %v342 = vpop.f32.mrb[0].mxu0
    %v343 = vadd.f32 0.0, %v342
    %v344 = vpop.f32.mrb[0].mxu0
    %v345 = vadd.f32 0.0, %v344
    %346 = vdwg.mxu0
    %vm347 = vcmp.eq.f32.partialorder %v274, 0.0
    %vm348 = vcmp.eq.f32.partialorder %v343, 0.0
    %vm349 = vcmp.eq.f32.partialorder %v345, 0.0
    %v350 = vsel %vm347, %v201, 0.0
    %v351 = vsel %vm348, %v203, 0.0
    %v352 = vsel %vm349, %v272, 0.0
    %v353 = vld [vmem:[%s4] sm:$0xff]
    %v354 = vld [vmem:[%s4 + $0x8] sm:$0xff]
    %v355 = vld [vmem:[%s4 + $0x10] sm:$0xff]
    %v356 = vld [vmem:[%s4 + $0x18] sm:$0xff]
    %v357 = vld [vmem:[%s4 + $0x20] sm:$0xff]
    %v358 = vld [vmem:[%s4 + $0x28] sm:$0xff]
    %v359 = vld [vmem:[%s4 + $0x30] sm:$0xff]
    %v360 = vld [vmem:[%s4 + $0x38] sm:$0xff]
    %v361 = vld [vmem:[%s4 + $0x40] sm:$0xff]
    %v362 = vld [vmem:[%s4 + $0x48] sm:$0xff]
    %v363 = vld [vmem:[%s4 + $0x50] sm:$0xff]
    %v364 = vld [vmem:[%s4 + $0x58] sm:$0xff]
    %v365 = vld [vmem:[%s4 + $0x60] sm:$0xff]
    %v366 = vld [vmem:[%s4 + $0x68] sm:$0xff]
    %v367 = vld [vmem:[%s4 + $0x70] sm:$0xff]
    %v368 = vld [vmem:[%s4 + $0x78] sm:$0xff]
    %v369 = vld [vmem:[%s4 + $0x80] sm:$0xff]
    %v370 = vld [vmem:[%s4 + $0x88] sm:$0xff]
    %v371 = vld [vmem:[%s4 + $0x90] sm:$0xff]
    %v372 = vld [vmem:[%s4 + $0x98] sm:$0xff]
    %v373 = vld [vmem:[%s4 + $0xa0] sm:$0xff]
    %v374 = vld [vmem:[%s4 + $0xa8] sm:$0xff]
    %v375 = vld [vmem:[%s4 + $0xb0] sm:$0xff]
    %v376 = vld [vmem:[%s4 + $0xb8] sm:$0xff]
    %v377 = vld [vmem:[%s4 + $0xc0] sm:$0xff]
    %v378 = vld [vmem:[%s4 + $0xc8] sm:$0xff]
    %v379 = vld [vmem:[%s4 + $0xd0] sm:$0xff]
    %v380 = vld [vmem:[%s4 + $0xd8] sm:$0xff]
    %v381 = vld [vmem:[%s4 + $0xe0] sm:$0xff]
    %v382 = vld [vmem:[%s4 + $0xe8] sm:$0xff]
    %v383 = vld [vmem:[%s4 + $0xf0] sm:$0xff]
    %v384 = vld [vmem:[%s4 + $0xf8] sm:$0xff]
    %v385 = vld [vmem:[%s4 + $0x100] sm:$0xf]
    %vm386 = vcmask 31744
    %v388 = vsel %vm386, %v352, 0
    %vm390 = vcmask 1043456
    %v392 = vsel %vm390, %v385, 0
    %394 = vmatprep.subr.mxu0 0.0
    %395 = vmatpush1.msra.mxu0 %v353
    %396 = vmatprep.subr.mxu0 0.0
    %397 = vmatpush1.msra.mxu0 %v354
    %398 = vmatprep.subr.mxu0 0.0
    %399 = vmatpush1.msra.mxu0 %v355
    %400 = vmatprep.subr.mxu0 0.0
    %401 = vmatpush1.msra.mxu0 %v356
    %402 = vmatprep.subr.mxu0 0.0
    %403 = vmatpush1.msra.mxu0 %v357
    %404 = vmatprep.subr.mxu0 0.0
    %405 = vmatpush1.msra.mxu0 %v358
    %406 = vmatprep.subr.mxu0 0.0
    %407 = vmatpush1.msra.mxu0 %v359
    %408 = vmatprep.subr.mxu0 0.0
    %409 = vmatpush1.msra.mxu0 %v360
    %410 = vmatprep.subr.mxu0 0.0
    %411 = vmatpush1.msra.mxu0 %v361
    %412 = vmatprep.subr.mxu0 0.0
    %413 = vmatpush1.msra.mxu0 %v362
    %414 = vmatprep.subr.mxu0 0.0
    %415 = vmatpush1.msra.mxu0 %v363
    %416 = vmatprep.subr.mxu0 0.0
    %417 = vmatpush1.msra.mxu0 %v364
    %418 = vmatprep.subr.mxu0 0.0
    %419 = vmatpush1.msra.mxu0 %v365
    %420 = vmatprep.subr.mxu0 0.0
    %421 = vmatpush1.msra.mxu0 %v366
    %422 = vmatprep.subr.mxu0 0.0
    %423 = vmatpush1.msra.mxu0 %v367
    %424 = vmatprep.subr.mxu0 0.0
    %425 = vmatpush1.msra.mxu0 %v368
    %426 = vmatprep.subr.mxu0 0.0
    %427 = vmatpush1.msra.mxu0 %v369
    %428 = vmatprep.subr.mxu0 0.0
    %429 = vmatpush1.msra.mxu0 %v370
    %430 = vmatprep.subr.mxu0 0.0
    %431 = vmatpush1.msra.mxu0 %v371
    %432 = vmatprep.subr.mxu0 0.0
    %433 = vmatpush1.msra.mxu0 %v372
    %434 = vmatprep.subr.mxu0 0.0
    %435 = vmatpush1.msra.mxu0 %v373
    %436 = vmatprep.subr.mxu0 0.0
    %437 = vmatpush1.msra.mxu0 %v374
    %438 = vmatprep.subr.mxu0 0.0
    %439 = vmatpush1.msra.mxu0 %v375
    %440 = vmatprep.subr.mxu0 0.0
    %441 = vmatpush1.msra.mxu0 %v376
    %442 = vmatprep.subr.mxu0 0.0
    %443 = vmatpush1.msra.mxu0 %v377
    %444 = vmatprep.subr.mxu0 0.0
    %445 = vmatpush1.msra.mxu0 %v378
    %446 = vmatprep.subr.mxu0 0.0
    %447 = vmatpush1.msra.mxu0 %v379
    %448 = vmatprep.subr.mxu0 0.0
    %449 = vmatpush1.msra.mxu0 %v380
    %450 = vmatprep.subr.mxu0 0.0
    %451 = vmatpush1.msra.mxu0 %v381
    %452 = vmatprep.subr.mxu0 0.0
    %453 = vmatpush1.msra.mxu0 %v382
    %454 = vmatprep.subr.mxu0 0.0
    %455 = vmatpush1.msra.mxu0 %v383
    %456 = vmatprep.subr.mxu0 0.0
    %457 = vmatpush1.msra.mxu0 %v384
    %458 = vmatprep.mubr.f32.mxu0 %v351
    %459 = vmatmul.mubr.f32.gmra.mrb[0].mxu0 %v350
    %v460 = vpop.f32.mrb[0].mxu0
    %v461 = vadd.f32 0.0, %v460
    %v462 = vpop.f32.mrb[0].mxu0
    %463 = vdwg.mxu0
    %464 = vmatprep.subr.mxu0 0.0
    %465 = vmatpush1.msra.mxu0 %v392
    %466 = vmatprep.subr.mxu0 0.0
    %467 = vmatpush1.msra.mxu0 0.0
    %468 = vmatprep.subr.mxu0 0.0
    %469 = vmatpush1.msra.mxu0 0.0
    %470 = vmatprep.subr.mxu0 0.0
    %471 = vmatpush1.msra.mxu0 0.0
    %472 = vmatprep.subr.mxu0 0.0
    %473 = vmatpush1.msra.mxu0 0.0
    %474 = vmatprep.subr.mxu0 0.0
    %475 = vmatpush1.msra.mxu0 0.0
    %476 = vmatprep.subr.mxu0 0.0
    %477 = vmatpush1.msra.mxu0 0.0
    %478 = vmatprep.subr.mxu0 0.0
    %479 = vmatpush1.msra.mxu0 0.0
    %480 = vmatprep.subr.mxu0 0.0
    %481 = vmatpush1.msra.mxu0 0.0
    %482 = vmatprep.subr.mxu0 0.0
    %483 = vmatpush1.msra.mxu0 0.0
    %484 = vmatprep.subr.mxu0 0.0
    %485 = vmatpush1.msra.mxu0 0.0
    %486 = vmatprep.subr.mxu0 0.0
    %487 = vmatpush1.msra.mxu0 0.0
    %488 = vmatprep.subr.mxu0 0.0
    %489 = vmatpush1.msra.mxu0 0.0
    %490 = vmatprep.subr.mxu0 0.0
    %491 = vmatpush1.msra.mxu0 0.0
    %492 = vmatprep.subr.mxu0 0.0
    %493 = vmatpush1.msra.mxu0 0.0
    %494 = vmatprep.subr.mxu0 0.0
    %495 = vmatpush1.msra.mxu0 0.0
    %496 = vmatprep.subr.mxu0 0.0
    %497 = vmatpush1.msra.mxu0 0.0
    %498 = vmatprep.subr.mxu0 0.0
    %499 = vmatpush1.msra.mxu0 0.0
    %500 = vmatprep.subr.mxu0 0.0
    %501 = vmatpush1.msra.mxu0 0.0
    %502 = vmatprep.subr.mxu0 0.0
    %503 = vmatpush1.msra.mxu0 0.0
    %504 = vmatprep.subr.mxu0 0.0
    %505 = vmatpush1.msra.mxu0 0.0
    %506 = vmatprep.subr.mxu0 0.0
    %507 = vmatpush1.msra.mxu0 0.0
    %508 = vmatprep.subr.mxu0 0.0
    %509 = vmatpush1.msra.mxu0 0.0
    %510 = vmatprep.subr.mxu0 0.0
    %511 = vmatpush1.msra.mxu0 0.0
    %512 = vmatprep.subr.mxu0 0.0
    %513 = vmatpush1.msra.mxu0 0.0
    %514 = vmatprep.subr.mxu0 0.0
    %515 = vmatpush1.msra.mxu0 0.0
    %516 = vmatprep.subr.mxu0 0.0
    %517 = vmatpush1.msra.mxu0 0.0
    %518 = vmatprep.subr.mxu0 0.0
    %519 = vmatpush1.msra.mxu0 0.0
    %520 = vmatprep.subr.mxu0 0.0
    %521 = vmatpush1.msra.mxu0 0.0
    %522 = vmatprep.subr.mxu0 0.0
    %523 = vmatpush1.msra.mxu0 0.0
    %524 = vmatprep.subr.mxu0 0.0
    %525 = vmatpush1.msra.mxu0 0.0
    %526 = vmatprep.subr.mxu0 0.0
    %527 = vmatpush1.msra.mxu0 0.0
    %528 = vmatprep.mubr.f32.mxu0 0.0
    %529 = vmatmul.mubr.f32.gmra.mrb[0].mxu0 %v388
    %v530 = vpop.f32.mrb[0].mxu0
    %v531 = vadd.f32 %v461, %v530
    %v532 = vpop.f32.mrb[0].mxu0
    %533 = vdwg.mxu0
    %v534 = vmul.f32 %v350, %v350
    %v535 = vmul.f32 %v351, %v351
    %v536 = vmul.f32 %v352, %v352
    %569 = vrot.lane.b32.xlu0 %v353, 122
    %v570 = vpop.permute.xlu0 %569
    %571 = vrot.lane.b32.xlu0 %v354, 122
    %v572 = vpop.permute.xlu0 %571
    %573 = vrot.lane.b32.xlu0 %v355, 122
    %v574 = vpop.permute.xlu0 %573
    %575 = vrot.lane.b32.xlu0 %v356, 122
    %v576 = vpop.permute.xlu0 %575
    %577 = vrot.lane.b32.xlu0 %v357, 122
    %v578 = vpop.permute.xlu0 %577
    %579 = vrot.lane.b32.xlu0 %v358, 122
    %v580 = vpop.permute.xlu0 %579
    %581 = vrot.lane.b32.xlu0 %v359, 122
    %v582 = vpop.permute.xlu0 %581
    %583 = vrot.lane.b32.xlu0 %v360, 122
    %v584 = vpop.permute.xlu0 %583
    %585 = vrot.lane.b32.xlu0 %v361, 122
    %v586 = vpop.permute.xlu0 %585
    %587 = vrot.lane.b32.xlu0 %v362, 122
    %v588 = vpop.permute.xlu0 %587
    %589 = vrot.lane.b32.xlu0 %v363, 122
    %v590 = vpop.permute.xlu0 %589
    %591 = vrot.lane.b32.xlu0 %v364, 122
    %v592 = vpop.permute.xlu0 %591
    %593 = vrot.lane.b32.xlu0 %v365, 122
    %v594 = vpop.permute.xlu0 %593
    %595 = vrot.lane.b32.xlu0 %v366, 122
    %v596 = vpop.permute.xlu0 %595
    %597 = vrot.lane.b32.xlu0 %v367, 122
    %v598 = vpop.permute.xlu0 %597
    %599 = vrot.lane.b32.xlu0 %v368, 122
    %v600 = vpop.permute.xlu0 %599
    %601 = vrot.lane.b32.xlu0 %v369, 122
    %v602 = vpop.permute.xlu0 %601
    %603 = vrot.lane.b32.xlu0 %v370, 122
    %v604 = vpop.permute.xlu0 %603
    %605 = vrot.lane.b32.xlu0 %v371, 122
    %v606 = vpop.permute.xlu0 %605
    %607 = vrot.lane.b32.xlu0 %v372, 122
    %v608 = vpop.permute.xlu0 %607
    %609 = vrot.lane.b32.xlu0 %v373, 122
    %v610 = vpop.permute.xlu0 %609
    %611 = vrot.lane.b32.xlu0 %v374, 122
    %v612 = vpop.permute.xlu0 %611
    %613 = vrot.lane.b32.xlu0 %v375, 122
    %v614 = vpop.permute.xlu0 %613
    %615 = vrot.lane.b32.xlu0 %v376, 122
    %v616 = vpop.permute.xlu0 %615
    %617 = vrot.lane.b32.xlu0 %v377, 122
    %v618 = vpop.permute.xlu0 %617
    %619 = vrot.lane.b32.xlu0 %v378, 122
    %v620 = vpop.permute.xlu0 %619
    %621 = vrot.lane.b32.xlu0 %v379, 122
    %v622 = vpop.permute.xlu0 %621
    %623 = vrot.lane.b32.xlu0 %v380, 122
    %v624 = vpop.permute.xlu0 %623
    %625 = vrot.lane.b32.xlu0 %v381, 122
    %v626 = vpop.permute.xlu0 %625
    %627 = vrot.lane.b32.xlu0 %v382, 122
    %v628 = vpop.permute.xlu0 %627
    %629 = vrot.lane.b32.xlu0 %v383, 122
    %v630 = vpop.permute.xlu0 %629
    %631 = vrot.lane.b32.xlu0 %v384, 122
    %v632 = vpop.permute.xlu0 %631
    %633 = vrot.lane.b32.xlu0 %v385, 122
    %v634 = vpop.permute.xlu0 %633
    %v668 = vsel %vm386, %v536, 0
    %v670 = vsel %vm390, %v634, 0
    %672 = vmatprep.subr.mxu0 0.0
    %673 = vmatpush1.msra.mxu0 %v570
    %674 = vmatprep.subr.mxu0 0.0
    %675 = vmatpush1.msra.mxu0 %v572
    %676 = vmatprep.subr.mxu0 0.0
    %677 = vmatpush1.msra.mxu0 %v574
    %678 = vmatprep.subr.mxu0 0.0
    %679 = vmatpush1.msra.mxu0 %v576
    %680 = vmatprep.subr.mxu0 0.0
    %681 = vmatpush1.msra.mxu0 %v578
    %682 = vmatprep.subr.mxu0 0.0
    %683 = vmatpush1.msra.mxu0 %v580
    %684 = vmatprep.subr.mxu0 0.0
    %685 = vmatpush1.msra.mxu0 %v582
    %686 = vmatprep.subr.mxu0 0.0
    %687 = vmatpush1.msra.mxu0 %v584
    %688 = vmatprep.subr.mxu0 0.0
    %689 = vmatpush1.msra.mxu0 %v586
    %690 = vmatprep.subr.mxu0 0.0
    %691 = vmatpush1.msra.mxu0 %v588
    %692 = vmatprep.subr.mxu0 0.0
    %693 = vmatpush1.msra.mxu0 %v590
    %694 = vmatprep.subr.mxu0 0.0
    %695 = vmatpush1.msra.mxu0 %v592
    %696 = vmatprep.subr.mxu0 0.0
    %697 = vmatpush1.msra.mxu0 %v594
    %698 = vmatprep.subr.mxu0 0.0
    %699 = vmatpush1.msra.mxu0 %v596
    %700 = vmatprep.subr.mxu0 0.0
    %701 = vmatpush1.msra.mxu0 %v598
    %702 = vmatprep.subr.mxu0 0.0
    %703 = vmatpush1.msra.mxu0 %v600
    %704 = vmatprep.subr.mxu0 0.0
    %705 = vmatpush1.msra.mxu0 %v602
    %706 = vmatprep.subr.mxu0 0.0
    %707 = vmatpush1.msra.mxu0 %v604
    %708 = vmatprep.subr.mxu0 0.0
    %709 = vmatpush1.msra.mxu0 %v606
    %710 = vmatprep.subr.mxu0 0.0
    %711 = vmatpush1.msra.mxu0 %v608
    %712 = vmatprep.subr.mxu0 0.0
    %713 = vmatpush1.msra.mxu0 %v610
    %714 = vmatprep.subr.mxu0 0.0
    %715 = vmatpush1.msra.mxu0 %v612
    %716 = vmatprep.subr.mxu0 0.0
    %717 = vmatpush1.msra.mxu0 %v614
    %718 = vmatprep.subr.mxu0 0.0
    %719 = vmatpush1.msra.mxu0 %v616
    %720 = vmatprep.subr.mxu0 0.0
    %721 = vmatpush1.msra.mxu0 %v618
    %722 = vmatprep.subr.mxu0 0.0
    %723 = vmatpush1.msra.mxu0 %v620
    %724 = vmatprep.subr.mxu0 0.0
    %725 = vmatpush1.msra.mxu0 %v622
    %726 = vmatprep.subr.mxu0 0.0
    %727 = vmatpush1.msra.mxu0 %v624
    %728 = vmatprep.subr.mxu0 0.0
    %729 = vmatpush1.msra.mxu0 %v626
    %730 = vmatprep.subr.mxu0 0.0
    %731 = vmatpush1.msra.mxu0 %v628
    %732 = vmatprep.subr.mxu0 0.0
    %733 = vmatpush1.msra.mxu0 %v630
    %734 = vmatprep.subr.mxu0 0.0
    %735 = vmatpush1.msra.mxu0 %v632
    %736 = vmatprep.mubr.f32.mxu0 %v535
    %737 = vmatmul.mubr.f32.gmra.mrb[0].mxu0 %v534
    %v738 = vpop.f32.mrb[0].mxu0
    %v739 = vadd.f32 0.0, %v738
    %v740 = vpop.f32.mrb[0].mxu0
    %741 = vdwg.mxu0
    %742 = vmatprep.subr.mxu0 0.0
    %743 = vmatpush1.msra.mxu0 %v670
    %744 = vmatprep.subr.mxu0 0.0
    %745 = vmatpush1.msra.mxu0 0.0
    %746 = vmatprep.subr.mxu0 0.0
    %747 = vmatpush1.msra.mxu0 0.0
    %748 = vmatprep.subr.mxu0 0.0
    %749 = vmatpush1.msra.mxu0 0.0
    %750 = vmatprep.subr.mxu0 0.0
    %751 = vmatpush1.msra.mxu0 0.0
    %752 = vmatprep.subr.mxu0 0.0
    %753 = vmatpush1.msra.mxu0 0.0
    %754 = vmatprep.subr.mxu0 0.0
    %755 = vmatpush1.msra.mxu0 0.0
    %756 = vmatprep.subr.mxu0 0.0
    %757 = vmatpush1.msra.mxu0 0.0
    %758 = vmatprep.subr.mxu0 0.0
    %759 = vmatpush1.msra.mxu0 0.0
    %760 = vmatprep.subr.mxu0 0.0
    %761 = vmatpush1.msra.mxu0 0.0
    %762 = vmatprep.subr.mxu0 0.0
    %763 = vmatpush1.msra.mxu0 0.0
    %764 = vmatprep.subr.mxu0 0.0
    %765 = vmatpush1.msra.mxu0 0.0
    %766 = vmatprep.subr.mxu0 0.0
    %767 = vmatpush1.msra.mxu0 0.0
    %768 = vmatprep.subr.mxu0 0.0
    %769 = vmatpush1.msra.mxu0 0.0
    %770 = vmatprep.subr.mxu0 0.0
    %771 = vmatpush1.msra.mxu0 0.0
    %772 = vmatprep.subr.mxu0 0.0
    %773 = vmatpush1.msra.mxu0 0.0
    %774 = vmatprep.subr.mxu0 0.0
    %775 = vmatpush1.msra.mxu0 0.0
    %776 = vmatprep.subr.mxu0 0.0
    %777 = vmatpush1.msra.mxu0 0.0
    %778 = vmatprep.subr.mxu0 0.0
    %779 = vmatpush1.msra.mxu0 0.0
    %780 = vmatprep.subr.mxu0 0.0
    %781 = vmatpush1.msra.mxu0 0.0
    %782 = vmatprep.subr.mxu0 0.0
    %783 = vmatpush1.msra.mxu0 0.0
    %784 = vmatprep.subr.mxu0 0.0
    %785 = vmatpush1.msra.mxu0 0.0
    %786 = vmatprep.subr.mxu0 0.0
    %787 = vmatpush1.msra.mxu0 0.0
    %788 = vmatprep.subr.mxu0 0.0
    %789 = vmatpush1.msra.mxu0 0.0
    %790 = vmatprep.subr.mxu0 0.0
    %791 = vmatpush1.msra.mxu0 0.0
    %792 = vmatprep.subr.mxu0 0.0
    %793 = vmatpush1.msra.mxu0 0.0
    %794 = vmatprep.subr.mxu0 0.0
    %795 = vmatpush1.msra.mxu0 0.0
    %796 = vmatprep.subr.mxu0 0.0
    %797 = vmatpush1.msra.mxu0 0.0
    %798 = vmatprep.subr.mxu0 0.0
    %799 = vmatpush1.msra.mxu0 0.0
    %800 = vmatprep.subr.mxu0 0.0
    %801 = vmatpush1.msra.mxu0 0.0
    %802 = vmatprep.subr.mxu0 0.0
    %803 = vmatpush1.msra.mxu0 0.0
    %804 = vmatprep.subr.mxu0 0.0
    %805 = vmatpush1.msra.mxu0 0.0
    %806 = vmatprep.mubr.f32.mxu0 0.0
    %807 = vmatmul.mubr.f32.gmra.mrb[0].mxu0 %v668
    %v808 = vpop.f32.mrb[0].mxu0
    %v809 = vadd.f32 %v739, %v808
    %v810 = vpop.f32.mrb[0].mxu0
    %811 = vdwg.mxu0
    %813 = vrot.lane.b32.xlu0 %v531, 56
    %v814 = vpop.permute.xlu0 %813
    %v816 = vadd.f32 %v272, %v814
    %v817 = vmul.f32 %v272, %v272
    %819 = vrot.lane.b32.xlu0 %v817, 124
    %v820 = vpop.permute.xlu0 %819
    %v822 = vsel %vm47, %v820, 0.0
    %823 = vadd.xlane.f32.xlu0 %v822
    %v824 = vpop.xlane.xlu0 %823
    %v825 = vmul.f32 %v816, %v816
    %827 = vrot.lane.b32.xlu0 %v825, 71
    %v828 = vpop.permute.xlu0 %827
    %v830 = vsel %vm386, %v828, 0.0
    %831 = vadd.xlane.f32.xlu0 %v830
    %v832 = vpop.xlane.xlu0 %831
    %v833 = vsub.f32 %v832, %v824
    %v834 = vsub.f32 %v833, %v809
    %v835 = vmul.f32 %v834, 0.5
    %837 = vrot.lane.b32.xlu0 %v835, 56
    %v838 = vpop.permute.xlu0 %837
    %v840 = vadd.f32 %v816, %v838
    %842 = vrot.lane.b32.xlu0 %v272, 123
    %v843 = vpop.permute.xlu0 %842
    %v845 = vadd.f32 %v840, %v843
    %846 = vrot.lane.b32.xlu0 %v531, 51
    %v847 = vpop.permute.xlu0 %846
    %v849 = vadd.f32 %v845, %v847
    %v850 = vld [vmem:[%s2] sm:$0xff]
    %852 = vrot.lane.b32.xlu0 %v850, 56
    %v853 = vpop.permute.xlu0 %852
    %v855 = vadd.f32 %v849, %v853
    %857 = vrot.lane.b32.xlu0 %v855, 72
    %v858 = vpop.permute.xlu0 %857
    %vm860 = vcmask 7168
    %861 = vst.msk [vmem:[%s5] sm:$0xff] %vm860, %v858
    // Predicated region
    $region26: #{tpu_custom_call.1} parent=1 // pred_check
      _
    $region27: #{tpu_custom_call.1} parent=1 // pred_check_branch
      %863 = sbr.rel (0) target = $region29
    $region28: #{tpu_custom_call.1} parent=1 // pred_region
      _
    $region29: #{tpu_custom_call.1} parent=1 // pred_fallthru
      _
    // Predicated region
    $region30: #{tpu_custom_call.1} parent=1 // pred_check
      _
    $region31: #{tpu_custom_call.1} parent=1 // pred_check_branch
      %865 = sbr.rel (0) target = $region33
    $region32: #{tpu_custom_call.1} parent=1 // pred_region
      _
    $region33: #{tpu_custom_call.1} parent=1 // pred_fallthru
      _
    %866 = vsyncpa [#allocation3], 1

</llo_original>
